<compile_context>
chip_gen: v7x
topology: tpu7x:2x2x1
jax: 0.10.0
libtpu: 0.0.40
codegen_flags: <defaults>
</compile_context>

<pallas_src>
import jax
import jax.numpy as jnp
from jax.experimental import pallas as pl
from jax.experimental.pallas import tpu as pltpu


def _cdiv(a, b):
    return -(-a // b)


def _round_up(x, m):
    return _cdiv(x, m) * m


def _pick_tile(dim, max_tile, align):
    """Largest tile <= max_tile that is a multiple of `align` and minimizes padding."""
    dim_aligned = _round_up(dim, align)
    if dim_aligned <= max_tile:
        return dim_aligned
    n_tiles = _cdiv(dim_aligned, max_tile)
    return _round_up(_cdiv(dim_aligned, n_tiles), align)


def _classifier_kernel(x_ref, w_ref, b_ref, o_ref, acc_ref):
    # x_ref: (TB, TK) bf16, w_ref: (TK, TO) bf16, b_ref: (1, TO) f32,
    # o_ref: (TB, TO) f32, acc_ref: (TB, TO) f32 scratch.
    k = pl.program_id(2)

    @pl.when(k == 0)
    def _init():
        acc_ref[...] = jnp.zeros_like(acc_ref)

    acc_ref[...] += jnp.dot(
        x_ref[...], w_ref[...], preferred_element_type=jnp.float32
    )

    @pl.when(k == pl.num_programs(2) - 1)
    def _finalize():
        # Bias add + sigmoid only once per (i, j) output tile, in f32.
        acc = acc_ref[...] + b_ref[...]
        o_ref[...] = jax.nn.sigmoid(acc).astype(o_ref.dtype)


def hierarchical_classifier_forward(
    x,
    w_t,
    b,
    *,
    compute_dtype=jnp.bfloat16,
    max_tile_b=256,
    max_tile_o=1024,
    max_tile_k=512,
):
    """x: (B, D) f32, w_t: (D, O) f32 (transposed nn.Linear weight), b: (O,) f32."""
    B, D = x.shape
    D2, O = w_t.shape
    assert D2 == D and b.shape == (O,)

    tile_b = _pick_tile(B, max_tile_b, 8)      # f32 sublane multiple
    tile_o = _pick_tile(O, max_tile_o, 128)    # lane-dense output stores
    tile_k = _pick_tile(D, max_tile_k, 128)

    B_pad = _round_up(B, tile_b)
    O_pad = _round_up(O, tile_o)
    D_pad = _round_up(D, tile_k)

    # Cast to bf16 for the MXU; zero-pad so every grid tile is fully in-bounds
    # (zero padding is exact for the matmul; padded rows/cols are sliced away).
    xc = x.astype(compute_dtype)
    wc = w_t.astype(compute_dtype)
    if B_pad != B or D_pad != D:
        xc = jnp.pad(xc, ((0, B_pad - B), (0, D_pad - D)))
    if D_pad != D or O_pad != O:
        wc = jnp.pad(wc, ((0, D_pad - D), (0, O_pad - O)))
    b2 = b.astype(jnp.float32)
    if O_pad != O:
        b2 = jnp.pad(b2, (0, O_pad - O))
    b2 = b2.reshape(1, O_pad)

    grid = (B_pad // tile_b, O_pad // tile_o, D_pad // tile_k)

    # Explicit VMEM budget: 2 buffers per input, 2 for the output, + f32 acc.
    itemsize = jnp.dtype(compute_dtype).itemsize
    vmem_bytes = (
        2 * (tile_b * tile_k * itemsize + tile_k * tile_o * itemsize + tile_o * 4)
        + 2 * tile_b * tile_o * 4
        + tile_b * tile_o * 4
    )
    vmem_limit = int(min(max(2 * vmem_bytes + (4 << 20), 16 << 20), 64 << 20))

    cost = pl.CostEstimate(
        flops=2 * B_pad * D_pad * O_pad,
        transcendentals=B_pad * O_pad,
        bytes_accessed=(
            B_pad * D_pad * itemsize
            + D_pad * O_pad * itemsize
            + O_pad * 4
            + B_pad * O_pad * 4
        ),
    )

    out = pl.pallas_call(
        _classifier_kernel,
        out_shape=jax.ShapeDtypeStruct((B_pad, O_pad), jnp.float32),
        grid_spec=pltpu.PrefetchScalarGridSpec(
            num_scalar_prefetch=0,
            grid=grid,
            in_specs=[
                pl.BlockSpec((tile_b, tile_k), lambda i, j, k: (i, k)),  # x
                pl.BlockSpec((tile_k, tile_o), lambda i, j, k: (k, j)),  # weight
                pl.BlockSpec((1, tile_o), lambda i, j, k: (0, j)),       # bias
            ],
            out_specs=pl.BlockSpec((tile_b, tile_o), lambda i, j, k: (i, j)),
            scratch_shapes=[pltpu.VMEM((tile_b, tile_o), jnp.float32)],
        ),
        compiler_params=pltpu.CompilerParams(
            dimension_semantics=("parallel", "parallel", "arbitrary"),
            vmem_limit_bytes=vmem_limit,
        ),
        cost_estimate=cost,
    )(xc, wc, b2)

    if B_pad != B or O_pad != O:
        out = out[:B, :O]
    return out


def l2_penalty(w_t, coeff=5e-05):
    # Same semantics as torch: coeff * sum(weight ** 2). Glue-level (no hot path).
    return coeff * jnp.sum(w_t.astype(jnp.float32) ** 2)


if __name__ == "__main__":
    # Small shapes consistent with the module (input_dim -> output_dim linear).
    B, D, O = 16, 768, 384

    key = jax.random.PRNGKey(0)
    kx, kw, kb = jax.random.split(key, 3)
    x = jax.random.normal(kx, (B, D), dtype=jnp.float32)

    # 1) Module's actual init: zero weight & bias -> sigmoid(0) == 0.5 everywhere.
    w0 = jnp.zeros((D, O), dtype=jnp.float32)   # (in, out) == transposed torch weight
    b0 = jnp.zeros((O,), dtype=jnp.float32)
    y0 = jax.block_until_ready(hierarchical_classifier_forward(x, w0, b0))
    assert y0.shape == (B, O)
    assert jnp.allclose(y0, 0.5), "zero-init check failed"

    # 2) Numerical check vs a plain-JAX reference using the same bf16 compute dtype.
    w_t = 0.05 * jax.random.normal(kw, (D, O), dtype=jnp.float32)
    b = 0.05 * jax.random.normal(kb, (O,), dtype=jnp.float32)
    y = jax.block_until_ready(hierarchical_classifier_forward(x, w_t, b))
    y_ref = jax.nn.sigmoid(
        jnp.dot(
            x.astype(jnp.bfloat16),
            w_t.astype(jnp.bfloat16),
            preferred_element_type=jnp.float32,
        )
        + b[None, :]
    )
    assert y.shape == (B, O)
    assert jnp.allclose(y, y_ref, atol=1e-4, rtol=1e-4), "mismatch vs reference"

    _ = jax.block_until_ready(l2_penalty(w_t))

    print("KERNEL_OK")
</pallas_src>

<mosaic_0001>
module attributes {stable_mosaic.version = 11 : i64} {
  func.func @_classifier_kernel(%arg0: i32, %arg1: i32, %arg2: i32, %arg3: memref<16x384xbf16, #tpu.memory_space<vmem>>, %arg4: memref<384x384xbf16, #tpu.memory_space<vmem>>, %arg5: memref<1x384xf32, #tpu.memory_space<vmem>>, %arg6: memref<16x384xf32, #tpu.memory_space<vmem>>, %arg7: memref<16x384xf32, #tpu.memory_space<vmem>>) attributes {dimension_semantics = [#tpu.dimension_semantics<parallel>, #tpu.dimension_semantics<parallel>, #tpu.dimension_semantics<arbitrary>], iteration_bounds = array<i64: 1, 1, 2>, scalar_prefetch = 0 : i64, scratch_operands = 1 : i64, tpu.core_type = #tpu.core_type<tc>, window_params = [{transform_indices = @transform_0, window_bounds = array<i64: 16, 384>}, {transform_indices = @transform_1, window_bounds = array<i64: 384, 384>}, {transform_indices = @transform_2, window_bounds = array<i64: 1, 384>}, {transform_indices = @transform_3, window_bounds = array<i64: 16, 384>}]} {
    %c0_i32 = arith.constant 0 : i32
    %0 = arith.cmpi eq, %arg2, %c0_i32 : i32
    %1 = arith.extui %0 : i1 to i32
    %c0_i32_0 = arith.constant 0 : i32
    %2 = arith.cmpi ne, %1, %c0_i32_0 : i32
    scf.if %2 {
      %cst_9 = arith.constant 0.000000e+00 : f32
      %12 = vector.broadcast %cst_9 : f32 to vector<16x384xf32>
      %c0_10 = arith.constant 0 : index
      %c0_11 = arith.constant 0 : index
      %13 = vector.load %arg7[%c0_10, %c0_11] : memref<16x384xf32, #tpu.memory_space<vmem>>, vector<16x384xf32>
      tpu.vector_store %arg7[%c0_10, %c0_11], %12 {strides = array<i32>} : memref<16x384xf32, #tpu.memory_space<vmem>>, vector<16x384xf32>,
    } else {
    }
    %c0 = arith.constant 0 : index
    %c0_1 = arith.constant 0 : index
    %3 = vector.load %arg7[%c0, %c0_1] : memref<16x384xf32, #tpu.memory_space<vmem>>, vector<16x384xf32>
    %c0_2 = arith.constant 0 : index
    %c0_3 = arith.constant 0 : index
    %4 = vector.load %arg3[%c0_2, %c0_3] : memref<16x384xbf16, #tpu.memory_space<vmem>>, vector<16x384xbf16>
    %c0_4 = arith.constant 0 : index
    %c0_5 = arith.constant 0 : index
    %5 = vector.load %arg4[%c0_4, %c0_5] : memref<384x384xbf16, #tpu.memory_space<vmem>>, vector<384x384xbf16>
    %cst = arith.constant dense<0.000000e+00> : vector<16x384xf32>
    %6 = tpu.matmul %4, %5, %cst {dimension_numbers = #tpu.dot_dimension_numbers<[1], [0], [0], [1], [0, 0, 1, 1], [], []>} : vector<16x384xbf16>, vector<384x384xbf16>, vector<16x384xf32> -> vector<16x384xf32>
    %7 = arith.addf %3, %6 : vector<16x384xf32>
    %c0_6 = arith.constant 0 : index
    %c0_7 = arith.constant 0 : index
    %8 = vector.load %arg7[%c0_6, %c0_7] : memref<16x384xf32, #tpu.memory_space<vmem>>, vector<16x384xf32>
    tpu.vector_store %arg7[%c0_6, %c0_7], %7 {strides = array<i32>} : memref<16x384xf32, #tpu.memory_space<vmem>>, vector<16x384xf32>,
    %c1_i32 = arith.constant 1 : i32
    %9 = arith.cmpi eq, %arg2, %c1_i32 : i32
    %10 = arith.extui %9 : i1 to i32
    %c0_i32_8 = arith.constant 0 : i32
    %11 = arith.cmpi ne, %10, %c0_i32_8 : i32
    scf.if %11 {
      %c0_9 = arith.constant 0 : index
      %c0_10 = arith.constant 0 : index
      %12 = vector.load %arg7[%c0_9, %c0_10] : memref<16x384xf32, #tpu.memory_space<vmem>>, vector<16x384xf32>
      %c0_11 = arith.constant 0 : index
      %c0_12 = arith.constant 0 : index
      %13 = vector.load %arg5[%c0_11, %c0_12] : memref<1x384xf32, #tpu.memory_space<vmem>>, vector<1x384xf32>
      %14 = vector.broadcast %13 : vector<1x384xf32> to vector<16x384xf32>
      %15 = arith.addf %12, %14 : vector<16x384xf32>
      %16 = arith.negf %15 : vector<16x384xf32>
      %17 = math.exp %16 : vector<16x384xf32>
      %cst_13 = arith.constant 1.000000e+00 : f32
      %18 = vector.broadcast %cst_13 : f32 to vector<16x384xf32>
      %19 = arith.addf %18, %17 : vector<16x384xf32>
      %20 = arith.divf %18, %19 : vector<16x384xf32>
      %c0_14 = arith.constant 0 : index
      %c0_15 = arith.constant 0 : index
      %21 = vector.load %arg6[%c0_14, %c0_15] : memref<16x384xf32, #tpu.memory_space<vmem>>, vector<16x384xf32>
      tpu.vector_store %arg6[%c0_14, %c0_15], %20 {strides = array<i32>} : memref<16x384xf32, #tpu.memory_space<vmem>>, vector<16x384xf32>,
    } else {
    }
    return
  }
  func.func @transform_0(%arg0: i32, %arg1: i32, %arg2: i32) -> (i32, i32) {
    %c0_i32 = arith.constant 0 : i32
    return %arg0, %arg2 : i32, i32
  }
  func.func @transform_1(%arg0: i32, %arg1: i32, %arg2: i32) -> (i32, i32) {
    %c0_i32 = arith.constant 0 : i32
    return %arg2, %arg1 : i32, i32
  }
  func.func @transform_2(%arg0: i32, %arg1: i32, %arg2: i32) -> (i32, i32) {
    %c0_i32 = arith.constant 0 : i32
    %c0_i32_0 = arith.constant 0 : i32
    return %c0_i32, %arg1 : i32, i32
  }
  func.func @transform_3(%arg0: i32, %arg1: i32, %arg2: i32) -> (i32, i32) {
    %c0_i32 = arith.constant 0 : i32
    return %arg0, %arg1 : i32, i32
  }
}

</mosaic_0001>

<llo_original>
// kernel: tpu_custom_call.1
$region0: #{tpu_custom_call.1}
  #allocation0 [shape = 'u32[]', space=smem, size = 0x4, offset = 0x4, fixed_abs, tag = 'smem constant byte address 0x4 - core index']
  #allocation1 [shape = 'u32[144,128]{1,0:T(1,128)}', space=vmem, size = 0x12000, scoped, tag = 'internal scratch']
  #allocation2 [shape = 'f32[16,384]{1,0:T(8,128)}', space=vmem, size = 0x6000, scoped, tag = 'scratch operand']
  %s0 = inlined_call_operand.hbm [shape: bf16[16,768], index: 0, kind: input, shape index: {}]
  %s1 = inlined_call_operand.hbm [shape: bf16[768,384], index: 1, kind: input, shape index: {}]
  %s2 = inlined_call_operand.vmem [shape: f32[1,384], index: 2, kind: input, shape index: {}]
  %s3 = inlined_call_operand.hbm [shape: f32[16,384], index: 3, kind: output, shape index: {}]
  %s4 = sld [smem:[#allocation0]]
  $region61: #{tpu_custom_call.1} parent=0
    _
  %s6 = ssub.s32 1, %s4
  %s7 = scalar_select 0, %s6, %s4
  $region1: #{tpu_custom_call.1} parent=0
    #allocation3 [shape = 'u8[24576]{0}', space=vmem, size = 0x6000, scoped, tag = 'input window, operand 0']
    #allocation4 [shape = 's32[2]{0}', space=sflag, size = 0x8, scoped, tag = 'scoped memory for tpu_custom_call.1']
    #allocation5 [shape = 's32[2]{0}', space=sflag, size = 0x8, scoped, tag = 'scoped memory for tpu_custom_call.1']
    #allocation6 [shape = 'u8[589824]{0}', space=vmem, size = 0x90000, scoped, tag = 'input window, operand 1']
    #allocation7 [shape = 's32[2]{0}', space=sflag, size = 0x8, scoped, tag = 'scoped memory for tpu_custom_call.1']
    #allocation8 [shape = 'u8[24576]{0}', space=vmem, size = 0x6000, scoped, tag = 'output window, operand 0, single buffered']
    %8 = vsyncpa [#allocation4], 0
    %s9 = scalar_lea.sflag [#allocation4], 1
    %10 = vsyncpa %s9, 0
    %11 = vsyncpa [#allocation7], 0
    %s12 = scalar_lea.sflag [#allocation7], 1
    %13 = vsyncpa %s12, 0
    %14 = vsyncpa [#allocation5], 0
    loop: start=0, step=1, limit=4
    $region2: #{tpu_custom_call.1} parent=1 // loop_pre_header
      _
    $region3: #{tpu_custom_call.1} parent=1 // loop_header
      %s16 = sphi 0, %s20
      %p17 = scmp.ge.s32.totalorder %s16, 4
      %s23 = sphi 0, %s42
      %s24 = sphi 0, %s38
      %s25 = sphi 0, %s34
      %s26 = sphi 0, %s23
      %s27 = sphi 0, %s24
      %s28 = sphi 0, %s25
      %s29 = sphi 0, %s26
      %s30 = sphi 0, %s27
      %s31 = sphi 0, %s28
      %s47 = sphi 0, %s49
      %s50 = sphi 0, %s47
      %s51 = sphi 0, %s50
      %s67 = sphi 0, %s51
      %s75 = sphi 0, %s77
      %s78 = sphi 0, %s75
      %s79 = sphi 0, %s78
      %s95 = sphi 0, %s79
      %s101 = sphi 0, %s103
      %s104 = sphi 0, %s101
      %s105 = sphi 0, %s104
      %s121 = sphi 0, %s105
      %s129 = sphi 0, %s131
      %s132 = sphi 0, %s129
      %s133 = sphi 0, %s132
      %s149 = sphi 0, %s133
    $region4: #{tpu_custom_call.1} parent=1 // loop_header_branch
      %19 = sbr.rel (%p17) target = $region8
    $region5: #{tpu_custom_call.1} parent=1 // loop_body
      %s21 = ssub.s32 %s16, 1
      %s22 = ssub.s32 %s16, 2
      %s32 = sadd.s32 1, %s25
      %p33 = scmp.ge.s32.totalorder %s32, 2
      %s34 = scalar_select %p33, 0, %s32
      %s35 = sadd.s32 1, %s24
      %s36 = scalar_select %p33, %s35, %s24
      %p37 = scmp.ge.s32.totalorder %s36, 1
      %s38 = scalar_select %p37, 0, %s36
      %s39 = sadd.s32 1, %s23
      %s40 = scalar_select %p37, %s39, %s23
      %p41 = scmp.ge.s32.totalorder %s40, 1
      %s42 = scalar_select %p41, 0, %s40
      %s43 = ssub.s32 %s23, %s42
      %s44 = ssub.s32 %s25, %s34
      %s45 = sor.u32 %s43, %s44
      %p46 = scmp.eq.s32.totalorder %s45, 0
      %s48 = sadd.s32 %s47, 1
      %s49 = scalar_select %p46, %s47, %s48
      %p52 = pneg %p46
      %p53 = scmp.eq.s32.totalorder %s16, 1
      %p54 = por %p52, %p53
      %p55 = scmp.ne.s32.totalorder %s47, %s50
      %p56 = scmp.eq.s32.totalorder %s16, 0
      %p57 = por %p55, %p56
      %p58 = scmp.ne.s32.totalorder %s47, %s50
      %p59 = scmp.eq.s32.totalorder %s21, 1
      %p60 = por %p58, %p59
      %p61 = scmp.ne.s32.totalorder %s50, %s51
      %p62 = scmp.eq.s32.totalorder %s21, 0
      %p63 = por %p61, %p62
      %p64 = scmp.ne.s32.totalorder %s50, %s51
      %p65 = scmp.eq.s32.totalorder %s22, 1
      %p66 = por %p64, %p65
      %p68 = scmp.ne.s32.totalorder %s51, %s67
      %p69 = scmp.eq.s32.totalorder %s22, 0
      %p70 = por %p68, %p69
      %s71 = ssub.s32 %s25, %s34
      %s72 = ssub.s32 %s24, %s38
      %s73 = sor.u32 %s71, %s72
      %p74 = scmp.eq.s32.totalorder %s73, 0
      %s76 = sadd.s32 %s75, 1
      %s77 = scalar_select %p74, %s75, %s76
      %p80 = pneg %p74
      %p81 = scmp.eq.s32.totalorder %s16, 1
      %p82 = por %p80, %p81
      %p83 = scmp.ne.s32.totalorder %s75, %s78
      %p84 = scmp.eq.s32.totalorder %s16, 0
      %p85 = por %p83, %p84
      %p86 = scmp.ne.s32.totalorder %s75, %s78
      %p87 = scmp.eq.s32.totalorder %s21, 1
      %p88 = por %p86, %p87
      %p89 = scmp.ne.s32.totalorder %s78, %s79
      %p90 = scmp.eq.s32.totalorder %s21, 0
      %p91 = por %p89, %p90
      %p92 = scmp.ne.s32.totalorder %s78, %s79
      %p93 = scmp.eq.s32.totalorder %s22, 1
      %p94 = por %p92, %p93
      %p96 = scmp.ne.s32.totalorder %s79, %s95
      %p97 = scmp.eq.s32.totalorder %s22, 0
      %p98 = por %p96, %p97
      %s99 = ssub.s32 %s24, %s38
      %p100 = scmp.eq.s32.totalorder %s99, 0
      %s102 = sadd.s32 %s101, 1
      %s103 = scalar_select %p100, %s101, %s102
      %p106 = pneg %p100
      %p107 = scmp.eq.s32.totalorder %s16, 1
      %p108 = por %p106, %p107
      %p109 = scmp.ne.s32.totalorder %s101, %s104
      %p110 = scmp.eq.s32.totalorder %s16, 0
      %p111 = por %p109, %p110
      %p112 = scmp.ne.s32.totalorder %s101, %s104
      %p113 = scmp.eq.s32.totalorder %s21, 1
      %p114 = por %p112, %p113
      %p115 = scmp.ne.s32.totalorder %s104, %s105
      %p116 = scmp.eq.s32.totalorder %s21, 0
      %p117 = por %p115, %p116
      %p118 = scmp.ne.s32.totalorder %s104, %s105
      %p119 = scmp.eq.s32.totalorder %s22, 1
      %p120 = por %p118, %p119
      %p122 = scmp.ne.s32.totalorder %s105, %s121
      %p123 = scmp.eq.s32.totalorder %s22, 0
      %p124 = por %p122, %p123
      %s125 = ssub.s32 %s23, %s42
      %s126 = ssub.s32 %s24, %s38
      %s127 = sor.u32 %s125, %s126
      %p128 = scmp.eq.s32.totalorder %s127, 0
      %s130 = sadd.s32 %s129, 1
      %s131 = scalar_select %p128, %s129, %s130
      %p134 = pneg %p128
      %p135 = scmp.eq.s32.totalorder %s16, 1
      %p136 = por %p134, %p135
      %p137 = scmp.ne.s32.totalorder %s129, %s132
      %p138 = scmp.eq.s32.totalorder %s16, 0
      %p139 = por %p137, %p138
      %p140 = scmp.ne.s32.totalorder %s129, %s132
      %p141 = scmp.eq.s32.totalorder %s21, 1
      %p142 = por %p140, %p141
      %p143 = scmp.ne.s32.totalorder %s132, %s133
      %p144 = scmp.eq.s32.totalorder %s21, 0
      %p145 = por %p143, %p144
      %p146 = scmp.ne.s32.totalorder %s132, %s133
      %p147 = scmp.eq.s32.totalorder %s22, 1
      %p148 = por %p146, %p147
      %p150 = scmp.ne.s32.totalorder %s133, %s149
      %p151 = scmp.eq.s32.totalorder %s22, 0
      %p152 = por %p150, %p151
      %p153 = scmp.le.s32.totalorder 1, %s16
      %p154 = scmp.lt.s32.totalorder %s16, 3
      %p155 = pnand %p153, %p154
      %p156 = pneg %p155
      // Predicated region
      $region9: #{tpu_custom_call.1} parent=5 // pred_check
        _
      $region10: #{tpu_custom_call.1} parent=5 // pred_check_branch
        %158 = sbr.rel (%p155) target = $region12
      $region11: #{tpu_custom_call.1} parent=5 // pred_region
        %s159 = ssub.s32 %s16, 1
        // Predicated region
        $region13: #{tpu_custom_call.1} parent=11 // pred_check
          %p160 = pneg %p117
        $region14: #{tpu_custom_call.1} parent=11 // pred_check_branch
          %162 = sbr.rel (%p160) target = $region16
        $region15: #{tpu_custom_call.1} parent=11 // pred_region
          %s163 = smul.u32 3, %s27
          %p164 = scmp.lt.s32.totalorder %s163, 2
          %s165 = scalar_select %p164, %s163, 2
          %s166 = scalar_lea.vmem %s2, %s165
          %s167 = smul.u32 3, %s27
        $region16: #{tpu_custom_call.1} parent=11 // pred_fallthru
          _
      $region12: #{tpu_custom_call.1} parent=5 // pred_fallthru
        _
      %p168 = scmp.lt.s32.totalorder %s16, 2
      // Predicated region
      $region17: #{tpu_custom_call.1} parent=5 // pred_check
        %p169 = pneg %p168
      $region18: #{tpu_custom_call.1} parent=5 // pred_check_branch
        %171 = sbr.rel (%p169) target = $region20
      $region19: #{tpu_custom_call.1} parent=5 // pred_region
        // Predicated region
        $region21: #{tpu_custom_call.1} parent=19 // pred_check
          %p172 = pneg %p57
        $region22: #{tpu_custom_call.1} parent=19 // pred_check_branch
          %174 = sbr.rel (%p172) target = $region24
        $region23: #{tpu_custom_call.1} parent=19 // pred_region
          %s175 = sand.u32 %s47, 1
          %s176 = scalar_lea.sflag [#allocation4], %s175
          %s177 = sand.u32 %s47, 1
          %s178 = smul.addr %s177, 24
          %s179 = scalar_lea.vmem [#allocation3], %s178
          %s180 = smul.u32 2, %s23
          %s181 = smul.u32 3, %s25
          %s183 = ssub.s32 384, 384
          %184 = vsyncadd %s176, %s183
          %s185 = smul.addr %s180, 6
          %s186 = sadd.s32 %s181, %s185
          %s187 = smul.addr %s186, 64
          %s188 = scalar_lea.hbm %s0, %s187
          %s189 = sshll.u32 %s179, 4
          %s190 = int_to_ptr.vmem [resolvable:$true] %s189
          %195 = dma.hbm_to_vmem [thread:$0]  %s188, 384, %s190, %s176, 384, 192, 12
        $region24: #{tpu_custom_call.1} parent=19 // pred_fallthru
          _
        // Predicated region
        $region25: #{tpu_custom_call.1} parent=19 // pred_check
          %p196 = pneg %p85
        $region26: #{tpu_custom_call.1} parent=19 // pred_check_branch
          %198 = sbr.rel (%p196) target = $region28
        $region27: #{tpu_custom_call.1} parent=19 // pred_region
          %s199 = sand.u32 %s75, 1
          %s200 = scalar_lea.sflag [#allocation7], %s199
          %s201 = sand.u32 %s75, 1
          %s202 = smul.addr %s201, 576
          %s203 = scalar_lea.vmem [#allocation6], %s202
          %s204 = smul.u32 48, %s25
          %s205 = smul.u32 3, %s24
          %s207 = ssub.s32 9216, 9216
          %208 = vsyncadd %s200, %s207
          %s209 = smul.addr %s204, 3
          %s210 = sadd.s32 %s205, %s209
          %s211 = smul.addr %s210, 64
          %s212 = scalar_lea.hbm %s1, %s211
          %s213 = sshll.u32 %s203, 4
          %s214 = int_to_ptr.vmem [resolvable:$true] %s213
          %219 = dma.hbm_to_vmem [thread:$0]  %s212, 9216, %s214, %s200, 192, 192, 12
        $region28: #{tpu_custom_call.1} parent=19 // pred_fallthru
          _
      $region20: #{tpu_custom_call.1} parent=5 // pred_fallthru
        _
      %p220 = scmp.le.s32.totalorder 1, %s16
      %p221 = scmp.lt.s32.totalorder %s16, 3
      %p222 = pnand %p220, %p221
      %p223 = pneg %p222
      // Predicated region
      $region29: #{tpu_custom_call.1} parent=5 // pred_check
        _
      $region30: #{tpu_custom_call.1} parent=5 // pred_check_branch
        %225 = sbr.rel (%p222) target = $region32
      $region31: #{tpu_custom_call.1} parent=5 // pred_region
        %s226 = ssub.s32 %s16, 1
        %s227 = sand.u32 %s50, 1
        %s228 = scalar_lea.sflag [#allocation4], %s227
        %s229 = sand.u32 %s50, 1
        %s230 = smul.addr %s229, 24
        %s231 = scalar_lea.vmem [#allocation3], %s230
        // Predicated region
        $region33: #{tpu_custom_call.1} parent=31 // pred_check
          %p232 = pneg %p63
        $region34: #{tpu_custom_call.1} parent=31 // pred_check_branch
          %234 = sbr.rel (%p232) target = $region36
        $region35: #{tpu_custom_call.1} parent=31 // pred_region
          %235 = dma.done %s228, 384
        $region36: #{tpu_custom_call.1} parent=31 // pred_fallthru
          _
        %s236 = sand.u32 %s78, 1
        %s237 = scalar_lea.sflag [#allocation7], %s236
        %s238 = sand.u32 %s78, 1
        %s239 = smul.addr %s238, 576
        %s240 = scalar_lea.vmem [#allocation6], %s239
        // Predicated region
        $region37: #{tpu_custom_call.1} parent=31 // pred_check
          %p241 = pneg %p91
        $region38: #{tpu_custom_call.1} parent=31 // pred_check_branch
          %243 = sbr.rel (%p241) target = $region40
        $region39: #{tpu_custom_call.1} parent=31 // pred_region
          %244 = dma.done %s237, 9216
        $region40: #{tpu_custom_call.1} parent=31 // pred_fallthru
          _
        %s245 = sand.u32 %s50, 1
        %s246 = scalar_lea.sflag [#allocation4], %s245
        %s247 = sand.u32 %s50, 1
        %s248 = smul.addr %s247, 24
        %s249 = scalar_lea.vmem [#allocation3], %s248
        %p250 = pneg %p63
        %p251 = pneg %p60
        %s252 = sand.u32 %s78, 1
        %s253 = scalar_lea.sflag [#allocation7], %s252
        %s254 = sand.u32 %s78, 1
        %s255 = smul.addr %s254, 576
        %s256 = scalar_lea.vmem [#allocation6], %s255
        %p257 = pneg %p91
        %p258 = pneg %p88
        %s259 = smul.u32 3, %s27
        %p260 = scmp.lt.s32.totalorder %s259, 2
        %s261 = scalar_select %p260, %s259, 2
        %s262 = scalar_lea.vmem %s2, %s261
        %p263 = pneg %p117
        %p264 = pneg %p114
        %p265 = pneg %p145
        %p266 = pneg %p142
        %s267 = smul.u32 2, %s26
        %s268 = smul.u32 3, %s28
        %s269 = smul.u32 48, %s28
        %s270 = smul.u32 3, %s27
        %s271 = smul.u32 3, %s27
        %p272 = scmp.lt.s32.totalorder %s271, 2
        %s273 = scalar_select %p272, %s271, 2
        %s274 = scalar_lea.vmem %s2, %s273
        %s275 = smul.u32 3, %s27
        %s276 = smul.u32 2, %s26
        %s277 = smul.u32 3, %s27
        %p279 = scmp.eq.s32.totalorder %s28, 0
        // Predicated region
        $region41: #{tpu_custom_call.1} parent=31 // pred_check
          %p280 = pneg %p279
        $region42: #{tpu_custom_call.1} parent=31 // pred_check_branch
          %282 = sbr.rel (%p280) target = $region44
        $region43: #{tpu_custom_call.1} parent=31 // pred_region
          %283 = vst [vmem:[#allocation2] sm:$0xff] 0.0
          %284 = vst [vmem:[#allocation2 + $0x8] sm:$0xff] 0.0
          %285 = vst [vmem:[#allocation2 + $0x10] sm:$0xff] 0.0
          %286 = vst [vmem:[#allocation2 + $0x18] sm:$0xff] 0.0
          %287 = vst [vmem:[#allocation2 + $0x20] sm:$0xff] 0.0
          %288 = vst [vmem:[#allocation2 + $0x28] sm:$0xff] 0.0
        $region44: #{tpu_custom_call.1} parent=31 // pred_fallthru
          _
        %v289 = vld [vmem:[#allocation2] sm:$0xff]
        %v290 = vld [vmem:[#allocation2 + $0x8] sm:$0xff]
        %v291 = vld [vmem:[#allocation2 + $0x10] sm:$0xff]
        %v292 = vld [vmem:[#allocation2 + $0x18] sm:$0xff]
        %v293 = vld [vmem:[#allocation2 + $0x20] sm:$0xff]
        %v294 = vld [vmem:[#allocation2 + $0x28] sm:$0xff]
        %v295 = vld [vmem:[%s231] sm:$0xff]
        %v296 = vld [vmem:[%s231 + $0x8] sm:$0xf]
        %v297 = vld [vmem:[%s231 + $0xc] sm:$0xff]
        %v298 = vld [vmem:[%s231 + $0x14] sm:$0xf]
        %v299 = vld [vmem:[%s240] sm:$0xff]
        %v300 = vld [vmem:[%s240 + $0x8] sm:$0xf]
        %v301 = vld [vmem:[%s240 + $0xc] sm:$0xff]
        %v302 = vld [vmem:[%s240 + $0x14] sm:$0xf]
        %v303 = vld [vmem:[%s240 + $0x18] sm:$0xff]
        %v304 = vld [vmem:[%s240 + $0x20] sm:$0xf]
        %v305 = vld [vmem:[%s240 + $0x24] sm:$0xff]
        %v306 = vld [vmem:[%s240 + $0x2c] sm:$0xf]
        %v307 = vld [vmem:[%s240 + $0x30] sm:$0xff]
        %v308 = vld [vmem:[%s240 + $0x38] sm:$0xf]
        %v309 = vld [vmem:[%s240 + $0x3c] sm:$0xff]
        %v310 = vld [vmem:[%s240 + $0x44] sm:$0xf]
        %v311 = vld [vmem:[%s240 + $0x48] sm:$0xff]
        %v312 = vld [vmem:[%s240 + $0x50] sm:$0xf]
        %v313 = vld [vmem:[%s240 + $0x54] sm:$0xff]
        %v314 = vld [vmem:[%s240 + $0x5c] sm:$0xf]
        %v315 = vld [vmem:[%s240 + $0x60] sm:$0xff]
        %v316 = vld [vmem:[%s240 + $0x68] sm:$0xf]
        %v317 = vld [vmem:[%s240 + $0x6c] sm:$0xff]
        %v318 = vld [vmem:[%s240 + $0x74] sm:$0xf]
        %v319 = vld [vmem:[%s240 + $0x78] sm:$0xff]
        %v320 = vld [vmem:[%s240 + $0x80] sm:$0xf]
        %v321 = vld [vmem:[%s240 + $0x84] sm:$0xff]
        %v322 = vld [vmem:[%s240 + $0x8c] sm:$0xf]
        %v323 = vld [vmem:[%s240 + $0x90] sm:$0xff]
        %v324 = vld [vmem:[%s240 + $0x98] sm:$0xf]
        %v325 = vld [vmem:[%s240 + $0x9c] sm:$0xff]
        %v326 = vld [vmem:[%s240 + $0xa4] sm:$0xf]
        %v327 = vld [vmem:[%s240 + $0xa8] sm:$0xff]
        %v328 = vld [vmem:[%s240 + $0xb0] sm:$0xf]
        %v329 = vld [vmem:[%s240 + $0xb4] sm:$0xff]
        %v330 = vld [vmem:[%s240 + $0xbc] sm:$0xf]
        %v331 = vld [vmem:[%s240 + $0xc0] sm:$0xff]
        %v332 = vld [vmem:[%s240 + $0xc8] sm:$0xf]
        %v333 = vld [vmem:[%s240 + $0xcc] sm:$0xff]
        %v334 = vld [vmem:[%s240 + $0xd4] sm:$0xf]
        %v335 = vld [vmem:[%s240 + $0xd8] sm:$0xff]
        %v336 = vld [vmem:[%s240 + $0xe0] sm:$0xf]
        %v337 = vld [vmem:[%s240 + $0xe4] sm:$0xff]
        %v338 = vld [vmem:[%s240 + $0xec] sm:$0xf]
        %v339 = vld [vmem:[%s240 + $0xf0] sm:$0xff]
        %v340 = vld [vmem:[%s240 + $0xf8] sm:$0xf]
        %v341 = vld [vmem:[%s240 + $0xfc] sm:$0xff]
        %v342 = vld [vmem:[%s240 + $0x104] sm:$0xf]
        %v343 = vld [vmem:[%s240 + $0x108] sm:$0xff]
        %v344 = vld [vmem:[%s240 + $0x110] sm:$0xf]
        %v345 = vld [vmem:[%s240 + $0x114] sm:$0xff]
        %v346 = vld [vmem:[%s240 + $0x11c] sm:$0xf]
        %v347 = vld [vmem:[%s240 + $0x120] sm:$0xff]
        %v348 = vld [vmem:[%s240 + $0x128] sm:$0xf]
        %v349 = vld [vmem:[%s240 + $0x12c] sm:$0xff]
        %v350 = vld [vmem:[%s240 + $0x134] sm:$0xf]
        %v351 = vld [vmem:[%s240 + $0x138] sm:$0xff]
        %v352 = vld [vmem:[%s240 + $0x140] sm:$0xf]
        %v353 = vld [vmem:[%s240 + $0x144] sm:$0xff]
        %v354 = vld [vmem:[%s240 + $0x14c] sm:$0xf]
        %v355 = vld [vmem:[%s240 + $0x150] sm:$0xff]
        %v356 = vld [vmem:[%s240 + $0x158] sm:$0xf]
        %v357 = vld [vmem:[%s240 + $0x15c] sm:$0xff]
        %v358 = vld [vmem:[%s240 + $0x164] sm:$0xf]
        %v359 = vld [vmem:[%s240 + $0x168] sm:$0xff]
        %v360 = vld [vmem:[%s240 + $0x170] sm:$0xf]
        %v361 = vld [vmem:[%s240 + $0x174] sm:$0xff]
        %v362 = vld [vmem:[%s240 + $0x17c] sm:$0xf]
        %v363 = vld [vmem:[%s240 + $0x180] sm:$0xff]
        %v364 = vld [vmem:[%s240 + $0x188] sm:$0xf]
        %v365 = vld [vmem:[%s240 + $0x18c] sm:$0xff]
        %v366 = vld [vmem:[%s240 + $0x194] sm:$0xf]
        %v367 = vld [vmem:[%s240 + $0x198] sm:$0xff]
        %v368 = vld [vmem:[%s240 + $0x1a0] sm:$0xf]
        %v369 = vld [vmem:[%s240 + $0x1a4] sm:$0xff]
        %v370 = vld [vmem:[%s240 + $0x1ac] sm:$0xf]
        %v371 = vld [vmem:[%s240 + $0x1b0] sm:$0xff]
        %v372 = vld [vmem:[%s240 + $0x1b8] sm:$0xf]
        %v373 = vld [vmem:[%s240 + $0x1bc] sm:$0xff]
        %v374 = vld [vmem:[%s240 + $0x1c4] sm:$0xf]
        %v375 = vld [vmem:[%s240 + $0x1c8] sm:$0xff]
        %v376 = vld [vmem:[%s240 + $0x1d0] sm:$0xf]
        %v377 = vld [vmem:[%s240 + $0x1d4] sm:$0xff]
        %v378 = vld [vmem:[%s240 + $0x1dc] sm:$0xf]
        %v379 = vld [vmem:[%s240 + $0x1e0] sm:$0xff]
        %v380 = vld [vmem:[%s240 + $0x1e8] sm:$0xf]
        %v381 = vld [vmem:[%s240 + $0x1ec] sm:$0xff]
        %v382 = vld [vmem:[%s240 + $0x1f4] sm:$0xf]
        %v383 = vld [vmem:[%s240 + $0x1f8] sm:$0xff]
        %v384 = vld [vmem:[%s240 + $0x200] sm:$0xf]
        %v385 = vld [vmem:[%s240 + $0x204] sm:$0xff]
        %v386 = vld [vmem:[%s240 + $0x20c] sm:$0xf]
        %v387 = vld [vmem:[%s240 + $0x210] sm:$0xff]
        %v388 = vld [vmem:[%s240 + $0x218] sm:$0xf]
        %v389 = vld [vmem:[%s240 + $0x21c] sm:$0xff]
        %v390 = vld [vmem:[%s240 + $0x224] sm:$0xf]
        %v391 = vld [vmem:[%s240 + $0x228] sm:$0xff]
        %v392 = vld [vmem:[%s240 + $0x230] sm:$0xf]
        %v393 = vld [vmem:[%s240 + $0x234] sm:$0xff]
        %v394 = vld [vmem:[%s240 + $0x23c] sm:$0xf]
        %v399 = vunpack.c.l.b16 %v295
        %v400 = vunpack.c.h.b16 %v295
        %v401 = vunpack.c.l.b16 %v296
        %v402 = vunpack.c.l.b16 %v297
        %v403 = vunpack.c.h.b16 %v297
        %v404 = vunpack.c.l.b16 %v298
        %v405 = vpack.c.b16 %v402, %v399
        %v406 = vpack.c.b16 %v403, %v400
        %v407 = vpack.c.b16 %v404, %v401
        %v507 = vunpack.c.l.b16 %v299
        %v508 = vunpack.c.h.b16 %v299
        %v509 = vunpack.c.l.b16 %v300
        %v510 = vunpack.c.l.b16 %v301
        %v511 = vunpack.c.h.b16 %v301
        %v512 = vunpack.c.l.b16 %v302
        %v513 = vunpack.c.l.b16 %v303
        %v514 = vunpack.c.h.b16 %v303
        %v515 = vunpack.c.l.b16 %v304
        %v516 = vunpack.c.l.b16 %v305
        %v517 = vunpack.c.h.b16 %v305
        %v518 = vunpack.c.l.b16 %v306
        %v519 = vunpack.c.l.b16 %v307
        %v520 = vunpack.c.h.b16 %v307
        %v521 = vunpack.c.l.b16 %v308
        %v522 = vunpack.c.l.b16 %v309
        %v523 = vunpack.c.h.b16 %v309
        %v524 = vunpack.c.l.b16 %v310
        %v525 = vunpack.c.l.b16 %v311
        %v526 = vunpack.c.h.b16 %v311
        %v527 = vunpack.c.l.b16 %v312
        %v528 = vunpack.c.l.b16 %v313
        %v529 = vunpack.c.h.b16 %v313
        %v530 = vunpack.c.l.b16 %v314
        %v531 = vunpack.c.l.b16 %v315
        %v532 = vunpack.c.h.b16 %v315
        %v533 = vunpack.c.l.b16 %v316
        %v534 = vunpack.c.l.b16 %v317
        %v535 = vunpack.c.h.b16 %v317
        %v536 = vunpack.c.l.b16 %v318
        %v537 = vunpack.c.l.b16 %v319
        %v538 = vunpack.c.h.b16 %v319
        %v539 = vunpack.c.l.b16 %v320
        %v540 = vunpack.c.l.b16 %v321
        %v541 = vunpack.c.h.b16 %v321
        %v542 = vunpack.c.l.b16 %v322
        %v543 = vunpack.c.l.b16 %v323
        %v544 = vunpack.c.h.b16 %v323
        %v545 = vunpack.c.l.b16 %v324
        %v546 = vunpack.c.l.b16 %v325
        %v547 = vunpack.c.h.b16 %v325
        %v548 = vunpack.c.l.b16 %v326
        %v549 = vunpack.c.l.b16 %v327
        %v550 = vunpack.c.h.b16 %v327
        %v551 = vunpack.c.l.b16 %v328
        %v552 = vunpack.c.l.b16 %v329
        %v553 = vunpack.c.h.b16 %v329
        %v554 = vunpack.c.l.b16 %v330
        %v555 = vunpack.c.l.b16 %v331
        %v556 = vunpack.c.h.b16 %v331
        %v557 = vunpack.c.l.b16 %v332
        %v558 = vunpack.c.l.b16 %v333
        %v559 = vunpack.c.h.b16 %v333
        %v560 = vunpack.c.l.b16 %v334
        %v561 = vunpack.c.l.b16 %v335
        %v562 = vunpack.c.h.b16 %v335
        %v563 = vunpack.c.l.b16 %v336
        %v564 = vunpack.c.l.b16 %v337
        %v565 = vunpack.c.h.b16 %v337
        %v566 = vunpack.c.l.b16 %v338
        %v567 = vunpack.c.l.b16 %v339
        %v568 = vunpack.c.h.b16 %v339
        %v569 = vunpack.c.l.b16 %v340
        %v570 = vunpack.c.l.b16 %v341
        %v571 = vunpack.c.h.b16 %v341
        %v572 = vunpack.c.l.b16 %v342
        %v573 = vunpack.c.l.b16 %v343
        %v574 = vunpack.c.h.b16 %v343
        %v575 = vunpack.c.l.b16 %v344
        %v576 = vunpack.c.l.b16 %v345
        %v577 = vunpack.c.h.b16 %v345
        %v578 = vunpack.c.l.b16 %v346
        %v579 = vunpack.c.l.b16 %v347
        %v580 = vunpack.c.h.b16 %v347
        %v581 = vunpack.c.l.b16 %v348
        %v582 = vunpack.c.l.b16 %v349
        %v583 = vunpack.c.h.b16 %v349
        %v584 = vunpack.c.l.b16 %v350
        %v585 = vunpack.c.l.b16 %v351
        %v586 = vunpack.c.h.b16 %v351
        %v587 = vunpack.c.l.b16 %v352
        %v588 = vunpack.c.l.b16 %v353
        %v589 = vunpack.c.h.b16 %v353
        %v590 = vunpack.c.l.b16 %v354
        %v591 = vunpack.c.l.b16 %v355
        %v592 = vunpack.c.h.b16 %v355
        %v593 = vunpack.c.l.b16 %v356
        %v594 = vunpack.c.l.b16 %v357
        %v595 = vunpack.c.h.b16 %v357
        %v596 = vunpack.c.l.b16 %v358
        %v597 = vunpack.c.l.b16 %v359
        %v598 = vunpack.c.h.b16 %v359
        %v599 = vunpack.c.l.b16 %v360
        %v600 = vunpack.c.l.b16 %v361
        %v601 = vunpack.c.h.b16 %v361
        %v602 = vunpack.c.l.b16 %v362
        %v603 = vunpack.c.l.b16 %v363
        %v604 = vunpack.c.h.b16 %v363
        %v605 = vunpack.c.l.b16 %v364
        %v606 = vunpack.c.l.b16 %v365
        %v607 = vunpack.c.h.b16 %v365
        %v608 = vunpack.c.l.b16 %v366
        %v609 = vunpack.c.l.b16 %v367
        %v610 = vunpack.c.h.b16 %v367
        %v611 = vunpack.c.l.b16 %v368
        %v612 = vunpack.c.l.b16 %v369
        %v613 = vunpack.c.h.b16 %v369
        %v614 = vunpack.c.l.b16 %v370
        %v615 = vunpack.c.l.b16 %v371
        %v616 = vunpack.c.h.b16 %v371
        %v617 = vunpack.c.l.b16 %v372
        %v618 = vunpack.c.l.b16 %v373
        %v619 = vunpack.c.h.b16 %v373
        %v620 = vunpack.c.l.b16 %v374
        %v621 = vunpack.c.l.b16 %v375
        %v622 = vunpack.c.h.b16 %v375
        %v623 = vunpack.c.l.b16 %v376
        %v624 = vunpack.c.l.b16 %v377
        %v625 = vunpack.c.h.b16 %v377
        %v626 = vunpack.c.l.b16 %v378
        %v627 = vunpack.c.l.b16 %v379
        %v628 = vunpack.c.h.b16 %v379
        %v629 = vunpack.c.l.b16 %v380
        %v630 = vunpack.c.l.b16 %v381
        %v631 = vunpack.c.h.b16 %v381
        %v632 = vunpack.c.l.b16 %v382
        %v633 = vunpack.c.l.b16 %v383
        %v634 = vunpack.c.h.b16 %v383
        %v635 = vunpack.c.l.b16 %v384
        %v636 = vunpack.c.l.b16 %v385
        %v637 = vunpack.c.h.b16 %v385
        %v638 = vunpack.c.l.b16 %v386
        %v639 = vunpack.c.l.b16 %v387
        %v640 = vunpack.c.h.b16 %v387
        %v641 = vunpack.c.l.b16 %v388
        %v642 = vunpack.c.l.b16 %v389
        %v643 = vunpack.c.h.b16 %v389
        %v644 = vunpack.c.l.b16 %v390
        %v645 = vunpack.c.l.b16 %v391
        %v646 = vunpack.c.h.b16 %v391
        %v647 = vunpack.c.l.b16 %v392
        %v648 = vunpack.c.l.b16 %v393
        %v649 = vunpack.c.h.b16 %v393
        %v650 = vunpack.c.l.b16 %v394
        %v651 = vpack.c.b16 %v510, %v507
        %v652 = vpack.c.b16 %v511, %v508
        %v653 = vpack.c.b16 %v512, %v509
        %v654 = vpack.c.b16 %v516, %v513
        %v655 = vpack.c.b16 %v517, %v514
        %v656 = vpack.c.b16 %v518, %v515
        %v657 = vpack.c.b16 %v522, %v519
        %v658 = vpack.c.b16 %v523, %v520
        %v659 = vpack.c.b16 %v524, %v521
        %v660 = vpack.c.b16 %v528, %v525
        %v661 = vpack.c.b16 %v529, %v526
        %v662 = vpack.c.b16 %v530, %v527
        %v663 = vpack.c.b16 %v534, %v531
        %v664 = vpack.c.b16 %v535, %v532
        %v665 = vpack.c.b16 %v536, %v533
        %v666 = vpack.c.b16 %v540, %v537
        %v667 = vpack.c.b16 %v541, %v538
        %v668 = vpack.c.b16 %v542, %v539
        %v669 = vpack.c.b16 %v546, %v543
        %v670 = vpack.c.b16 %v547, %v544
        %v671 = vpack.c.b16 %v548, %v545
        %v672 = vpack.c.b16 %v552, %v549
        %v673 = vpack.c.b16 %v553, %v550
        %v674 = vpack.c.b16 %v554, %v551
        %v675 = vpack.c.b16 %v558, %v555
        %v676 = vpack.c.b16 %v559, %v556
        %v677 = vpack.c.b16 %v560, %v557
        %v678 = vpack.c.b16 %v564, %v561
        %v679 = vpack.c.b16 %v565, %v562
        %v680 = vpack.c.b16 %v566, %v563
        %v681 = vpack.c.b16 %v570, %v567
        %v682 = vpack.c.b16 %v571, %v568
        %v683 = vpack.c.b16 %v572, %v569
        %v684 = vpack.c.b16 %v576, %v573
        %v685 = vpack.c.b16 %v577, %v574
        %v686 = vpack.c.b16 %v578, %v575
        %v687 = vpack.c.b16 %v582, %v579
        %v688 = vpack.c.b16 %v583, %v580
        %v689 = vpack.c.b16 %v584, %v581
        %v690 = vpack.c.b16 %v588, %v585
        %v691 = vpack.c.b16 %v589, %v586
        %v692 = vpack.c.b16 %v590, %v587
        %v693 = vpack.c.b16 %v594, %v591
        %v694 = vpack.c.b16 %v595, %v592
        %v695 = vpack.c.b16 %v596, %v593
        %v696 = vpack.c.b16 %v600, %v597
        %v697 = vpack.c.b16 %v601, %v598
        %v698 = vpack.c.b16 %v602, %v599
        %v699 = vpack.c.b16 %v606, %v603
        %v700 = vpack.c.b16 %v607, %v604
        %v701 = vpack.c.b16 %v608, %v605
        %v702 = vpack.c.b16 %v612, %v609
        %v703 = vpack.c.b16 %v613, %v610
        %v704 = vpack.c.b16 %v614, %v611
        %v705 = vpack.c.b16 %v618, %v615
        %v706 = vpack.c.b16 %v619, %v616
        %v707 = vpack.c.b16 %v620, %v617
        %v708 = vpack.c.b16 %v624, %v621
        %v709 = vpack.c.b16 %v625, %v622
        %v710 = vpack.c.b16 %v626, %v623
        %v711 = vpack.c.b16 %v630, %v627
        %v712 = vpack.c.b16 %v631, %v628
        %v713 = vpack.c.b16 %v632, %v629
        %v714 = vpack.c.b16 %v636, %v633
        %v715 = vpack.c.b16 %v637, %v634
        %v716 = vpack.c.b16 %v638, %v635
        %v717 = vpack.c.b16 %v642, %v639
        %v718 = vpack.c.b16 %v643, %v640
        %v719 = vpack.c.b16 %v644, %v641
        %v720 = vpack.c.b16 %v648, %v645
        %v721 = vpack.c.b16 %v649, %v646
        %v722 = vpack.c.b16 %v650, %v647
        %795 = vmatprep.subr.bf16.mxu0 %v652
        %796 = vmatpush1.bf16.msra.mxu0 %v651
        %797 = vmatprep.subr.bf16.mxu0 %v655
        %798 = vmatpush1.bf16.msra.mxu0 %v654
        %799 = vmatprep.subr.bf16.mxu0 %v658
        %800 = vmatpush1.bf16.msra.mxu0 %v657
        %801 = vmatprep.subr.bf16.mxu0 %v661
        %802 = vmatpush1.bf16.msra.mxu0 %v660
        %803 = vmatprep.subr.bf16.mxu0 %v664
        %804 = vmatpush1.bf16.msra.mxu0 %v663
        %805 = vmatprep.subr.bf16.mxu0 %v667
        %806 = vmatpush1.bf16.msra.mxu0 %v666
        %807 = vmatprep.subr.bf16.mxu0 %v670
        %808 = vmatpush1.bf16.msra.mxu0 %v669
        %809 = vmatprep.subr.bf16.mxu0 %v673
        %810 = vmatpush1.bf16.msra.mxu0 %v672
        %811 = vmatprep.subr.bf16.mxu0 %v676
        %812 = vmatpush1.bf16.msra.mxu0 %v675
        %813 = vmatprep.subr.bf16.mxu0 %v679
        %814 = vmatpush1.bf16.msra.mxu0 %v678
        %815 = vmatprep.subr.bf16.mxu0 %v682
        %816 = vmatpush1.bf16.msra.mxu0 %v681
        %817 = vmatprep.subr.bf16.mxu0 %v685
        %818 = vmatpush1.bf16.msra.mxu0 %v684
        %819 = vmatprep.subr.bf16.mxu0 %v688
        %820 = vmatpush1.bf16.msra.mxu0 %v687
        %821 = vmatprep.subr.bf16.mxu0 %v691
        %822 = vmatpush1.bf16.msra.mxu0 %v690
        %823 = vmatprep.subr.bf16.mxu0 %v694
        %824 = vmatpush1.bf16.msra.mxu0 %v693
        %825 = vmatprep.subr.bf16.mxu0 %v697
        %826 = vmatpush1.bf16.msra.mxu0 %v696
        %827 = vmatprep.mubr.bf16.mxu0 %v406
        %828 = vmatmul.mubr.bf16.gmra.mrb[0].mxu0 %v405
        %v829 = vpop.f32.mrb[0].mxu0
        %v830 = vadd.f32 0.0, %v829
        %v831 = vpop.f32.mrb[0].mxu0
        %v832 = vadd.f32 0.0, %v831
        %v833 = vpop.f32.mrb[0].mxu0
        %v834 = vadd.f32 0.0, %v833
        %v835 = vpop.f32.mrb[0].mxu0
        %v836 = vadd.f32 0.0, %v835
        %837 = vdwg.mxu0
        %838 = vmatprep.subr.bf16.mxu0 %v700
        %839 = vmatpush1.bf16.msra.mxu0 %v699
        %840 = vmatprep.subr.bf16.mxu0 %v703
        %841 = vmatpush1.bf16.msra.mxu0 %v702
        %842 = vmatprep.subr.bf16.mxu0 %v706
        %843 = vmatpush1.bf16.msra.mxu0 %v705
        %844 = vmatprep.subr.bf16.mxu0 %v709
        %845 = vmatpush1.bf16.msra.mxu0 %v708
        %846 = vmatprep.subr.bf16.mxu0 %v712
        %847 = vmatpush1.bf16.msra.mxu0 %v711
        %848 = vmatprep.subr.bf16.mxu0 %v715
        %849 = vmatpush1.bf16.msra.mxu0 %v714
        %850 = vmatprep.subr.bf16.mxu0 %v718
        %851 = vmatpush1.bf16.msra.mxu0 %v717
        %852 = vmatprep.subr.bf16.mxu0 %v721
        %853 = vmatpush1.bf16.msra.mxu0 %v720
        %854 = vmatprep.subr.bf16.mxu0 0
        %855 = vmatpush1.bf16.msra.mxu0 0
        %856 = vmatprep.subr.bf16.mxu0 0
        %857 = vmatpush1.bf16.msra.mxu0 0
        %858 = vmatprep.subr.bf16.mxu0 0
        %859 = vmatpush1.bf16.msra.mxu0 0
        %860 = vmatprep.subr.bf16.mxu0 0
        %861 = vmatpush1.bf16.msra.mxu0 0
        %862 = vmatprep.subr.bf16.mxu0 0
        %863 = vmatpush1.bf16.msra.mxu0 0
        %864 = vmatprep.subr.bf16.mxu0 0
        %865 = vmatpush1.bf16.msra.mxu0 0
        %866 = vmatprep.subr.bf16.mxu0 0
        %867 = vmatpush1.bf16.msra.mxu0 0
        %868 = vmatprep.subr.bf16.mxu0 0
        %869 = vmatpush1.bf16.msra.mxu0 0
        %870 = vmatprep.mubr.bf16.mxu0 0
        %871 = vmatmul.mubr.bf16.gmra.mrb[0].mxu0 %v407
        %v872 = vpop.f32.mrb[0].mxu0
        %v873 = vadd.f32 %v830, %v872
        %v874 = vpop.f32.mrb[0].mxu0
        %v875 = vadd.f32 %v832, %v874
        %v876 = vpop.f32.mrb[0].mxu0
        %v877 = vadd.f32 %v834, %v876
        %v878 = vpop.f32.mrb[0].mxu0
        %v879 = vadd.f32 %v836, %v878
        %880 = vdwg.mxu0
        %881 = vmatprep.subr.bf16.mxu0 0
        %882 = vmatpush1.bf16.msra.mxu0 %v653
        %883 = vmatprep.subr.bf16.mxu0 0
        %884 = vmatpush1.bf16.msra.mxu0 %v656
        %885 = vmatprep.subr.bf16.mxu0 0
        %886 = vmatpush1.bf16.msra.mxu0 %v659
        %887 = vmatprep.subr.bf16.mxu0 0
        %888 = vmatpush1.bf16.msra.mxu0 %v662
        %889 = vmatprep.subr.bf16.mxu0 0
        %890 = vmatpush1.bf16.msra.mxu0 %v665
        %891 = vmatprep.subr.bf16.mxu0 0
        %892 = vmatpush1.bf16.msra.mxu0 %v668
        %893 = vmatprep.subr.bf16.mxu0 0
        %894 = vmatpush1.bf16.msra.mxu0 %v671
        %895 = vmatprep.subr.bf16.mxu0 0
        %896 = vmatpush1.bf16.msra.mxu0 %v674
        %897 = vmatprep.subr.bf16.mxu0 0
        %898 = vmatpush1.bf16.msra.mxu0 %v677
        %899 = vmatprep.subr.bf16.mxu0 0
        %900 = vmatpush1.bf16.msra.mxu0 %v680
        %901 = vmatprep.subr.bf16.mxu0 0
        %902 = vmatpush1.bf16.msra.mxu0 %v683
        %903 = vmatprep.subr.bf16.mxu0 0
        %904 = vmatpush1.bf16.msra.mxu0 %v686
        %905 = vmatprep.subr.bf16.mxu0 0
        %906 = vmatpush1.bf16.msra.mxu0 %v689
        %907 = vmatprep.subr.bf16.mxu0 0
        %908 = vmatpush1.bf16.msra.mxu0 %v692
        %909 = vmatprep.subr.bf16.mxu0 0
        %910 = vmatpush1.bf16.msra.mxu0 %v695
        %911 = vmatprep.subr.bf16.mxu0 0
        %912 = vmatpush1.bf16.msra.mxu0 %v698
        %913 = vmatprep.mubr.bf16.mxu0 %v406
        %914 = vmatmul.mubr.bf16.gmra.mrb[0].mxu0 %v405
        %v915 = vpop.f32.mrb[0].mxu0
        %v916 = vadd.f32 0.0, %v915
        %v917 = vpop.f32.mrb[0].mxu0
        %v918 = vpop.f32.mrb[0].mxu0
        %v919 = vadd.f32 0.0, %v918
        %v920 = vpop.f32.mrb[0].mxu0
        %921 = vdwg.mxu0
        %922 = vmatprep.subr.bf16.mxu0 0
        %923 = vmatpush1.bf16.msra.mxu0 %v701
        %924 = vmatprep.subr.bf16.mxu0 0
        %925 = vmatpush1.bf16.msra.mxu0 %v704
        %926 = vmatprep.subr.bf16.mxu0 0
        %927 = vmatpush1.bf16.msra.mxu0 %v707
        %928 = vmatprep.subr.bf16.mxu0 0
        %929 = vmatpush1.bf16.msra.mxu0 %v710
        %930 = vmatprep.subr.bf16.mxu0 0
        %931 = vmatpush1.bf16.msra.mxu0 %v713
        %932 = vmatprep.subr.bf16.mxu0 0
        %933 = vmatpush1.bf16.msra.mxu0 %v716
        %934 = vmatprep.subr.bf16.mxu0 0
        %935 = vmatpush1.bf16.msra.mxu0 %v719
        %936 = vmatprep.subr.bf16.mxu0 0
        %937 = vmatpush1.bf16.msra.mxu0 %v722
        %938 = vmatprep.subr.bf16.mxu0 0
        %939 = vmatpush1.bf16.msra.mxu0 0
        %940 = vmatprep.subr.bf16.mxu0 0
        %941 = vmatpush1.bf16.msra.mxu0 0
        %942 = vmatprep.subr.bf16.mxu0 0
        %943 = vmatpush1.bf16.msra.mxu0 0
        %944 = vmatprep.subr.bf16.mxu0 0
        %945 = vmatpush1.bf16.msra.mxu0 0
        %946 = vmatprep.subr.bf16.mxu0 0
        %947 = vmatpush1.bf16.msra.mxu0 0
        %948 = vmatprep.subr.bf16.mxu0 0
        %949 = vmatpush1.bf16.msra.mxu0 0
        %950 = vmatprep.subr.bf16.mxu0 0
        %951 = vmatpush1.bf16.msra.mxu0 0
        %952 = vmatprep.subr.bf16.mxu0 0
        %953 = vmatpush1.bf16.msra.mxu0 0
        %954 = vmatprep.mubr.bf16.mxu0 0
        %955 = vmatmul.mubr.bf16.gmra.mrb[0].mxu0 %v407
        %v956 = vpop.f32.mrb[0].mxu0
        %v957 = vadd.f32 %v916, %v956
        %v958 = vpop.f32.mrb[0].mxu0
        %v959 = vpop.f32.mrb[0].mxu0
        %v960 = vadd.f32 %v919, %v959
        %v961 = vpop.f32.mrb[0].mxu0
        %962 = vdwg.mxu0
        %v963 = vadd.f32 %v289, %v873
        %v964 = vadd.f32 %v290, %v875
        %v965 = vadd.f32 %v291, %v957
        %v966 = vadd.f32 %v292, %v877
        %v967 = vadd.f32 %v293, %v879
        %v968 = vadd.f32 %v294, %v960
        %969 = vst [vmem:[#allocation2] sm:$0xff] %v963
        %970 = vst [vmem:[#allocation2 + $0x8] sm:$0xff] %v964
        %971 = vst [vmem:[#allocation2 + $0x10] sm:$0xff] %v965
        %972 = vst [vmem:[#allocation2 + $0x18] sm:$0xff] %v966
        %973 = vst [vmem:[#allocation2 + $0x20] sm:$0xff] %v967
        %974 = vst [vmem:[#allocation2 + $0x28] sm:$0xff] %v968
        %p975 = scmp.eq.s32.totalorder %s28, 1
        // Predicated region
        $region45: #{tpu_custom_call.1} parent=31 // pred_check
          %p976 = pneg %p975
        $region46: #{tpu_custom_call.1} parent=31 // pred_check_branch
          %978 = sbr.rel (%p976) target = $region48
        $region47: #{tpu_custom_call.1} parent=31 // pred_region
          %v979 = vld [vmem:[#allocation2] sm:$0xff]
          %v980 = vld [vmem:[#allocation2 + $0x8] sm:$0xff]
          %v981 = vld [vmem:[#allocation2 + $0x10] sm:$0xff]
          %v982 = vld [vmem:[#allocation2 + $0x18] sm:$0xff]
          %v983 = vld [vmem:[#allocation2 + $0x20] sm:$0xff]
          %v984 = vld [vmem:[#allocation2 + $0x28] sm:$0xff]
          %v985 = vld [vmem:[%s274] sm:$0x7]
          %v987 = vlaneseq
          %v988 = vshrl.u32 %v987, 7
          %v989 = vsub.s32 0, %v988
          %v990 = vrot.slane %v985, %v989
          %v991 = vlaneseq
          %v992 = vshrl.u32 %v991, 7
          %v993 = vsub.s32 1, %v992
          %v994 = vrot.slane %v985, %v993
          %v995 = vlaneseq
          %v996 = vshrl.u32 %v995, 7
          %v997 = vsub.s32 2, %v996
          %v998 = vrot.slane %v985, %v997
          %v1002 = vadd.f32 %v979, %v990
          %v1003 = vadd.f32 %v980, %v994
          %v1004 = vadd.f32 %v981, %v998
          %v1005 = vadd.f32 %v982, %v990
          %v1006 = vadd.f32 %v983, %v994
          %v1007 = vadd.f32 %v984, %v998
          %v1008 = vxor.u32 %v1002, 2147483648
          %v1009 = vxor.u32 %v1003, 2147483648
          %v1010 = vxor.u32 %v1004, 2147483648
          %v1011 = vxor.u32 %v1005, 2147483648
          %v1012 = vxor.u32 %v1006, 2147483648
          %v1013 = vxor.u32 %v1007, 2147483648
          %v1014 = vmul.f32 %v1008, 1.442695
          %v1015 = vpow.pop %v1014
          %v1016 = vmul.f32 %v1009, 1.442695
          %v1017 = vpow.pop %v1016
          %v1018 = vmul.f32 %v1010, 1.442695
          %v1019 = vpow.pop %v1018
          %v1020 = vmul.f32 %v1011, 1.442695
          %v1021 = vpow.pop %v1020
          %v1022 = vmul.f32 %v1012, 1.442695
          %v1023 = vpow.pop %v1022
          %v1024 = vmul.f32 %v1013, 1.442695
          %v1025 = vpow.pop %v1024
          %v1026 = vadd.f32 %v1015, 1.0
          %v1027 = vadd.f32 %v1017, 1.0
          %v1028 = vadd.f32 %v1019, 1.0
          %v1029 = vadd.f32 %v1021, 1.0
          %v1030 = vadd.f32 %v1023, 1.0
          %v1031 = vadd.f32 %v1025, 1.0
          %v1032 = vrcp.pop %v1026
          %v1033 = vmul.f32 1.0, %v1032
          %v1034 = vrcp.pop %v1027
          %v1035 = vmul.f32 1.0, %v1034
          %v1036 = vrcp.pop %v1028
          %v1037 = vmul.f32 1.0, %v1036
          %v1038 = vrcp.pop %v1029
          %v1039 = vmul.f32 1.0, %v1038
          %v1040 = vrcp.pop %v1030
          %v1041 = vmul.f32 1.0, %v1040
          %v1042 = vrcp.pop %v1031
          %v1043 = vmul.f32 1.0, %v1042
          %1044 = vst [vmem:[#allocation8] sm:$0xff] %v1033
          %1045 = vst [vmem:[#allocation8 + $0x8] sm:$0xff] %v1035
          %1046 = vst [vmem:[#allocation8 + $0x10] sm:$0xff] %v1037
          %1047 = vst [vmem:[#allocation8 + $0x18] sm:$0xff] %v1039
          %1048 = vst [vmem:[#allocation8 + $0x20] sm:$0xff] %v1041
          %1049 = vst [vmem:[#allocation8 + $0x28] sm:$0xff] %v1043
        $region48: #{tpu_custom_call.1} parent=31 // pred_fallthru
          _
        // Predicated region
        $region49: #{tpu_custom_call.1} parent=31 // pred_check
          %p1050 = pneg %p142
        $region50: #{tpu_custom_call.1} parent=31 // pred_check_branch
          %1052 = sbr.rel (%p1050) target = $region52
        $region51: #{tpu_custom_call.1} parent=31 // pred_region
          %s1053 = smul.u32 2, %s26
          %s1054 = smul.u32 3, %s27
          %s1056 = ssub.s32 768, 768
          %1057 = vsyncadd [#allocation5], %s1056
          %s1058 = smul.addr %s1053, 3
          %s1059 = sadd.s32 %s1054, %s1058
          %s1060 = smul.addr %s1059, 128
          %s1061 = scalar_lea.hbm %s3, %s1060
          %s1062 = sshll.u32 [#allocation8], 4
          %s1063 = int_to_ptr.vmem [resolvable:$true] %s1062
          %1068 = dma.vmem_to_hbm [thread:$0]  %s1063, 768, %s1061, [#allocation5], 384, 384, 24
        $region52: #{tpu_custom_call.1} parent=31 // pred_fallthru
          _
        // Predicated region
        $region53: #{tpu_custom_call.1} parent=31 // pred_check
          %p1069 = pneg %p142
        $region54: #{tpu_custom_call.1} parent=31 // pred_check_branch
          %1071 = sbr.rel (%p1069) target = $region56
        $region55: #{tpu_custom_call.1} parent=31 // pred_region
          %1072 = dma.done [#allocation5], 768
        $region56: #{tpu_custom_call.1} parent=31 // pred_fallthru
          _
      $region32: #{tpu_custom_call.1} parent=5 // pred_fallthru
        _
      %p1073 = scmp.le.s32.totalorder 2, %s16
      // Predicated region
      $region57: #{tpu_custom_call.1} parent=5 // pred_check
        %p1074 = pneg %p1073
      $region58: #{tpu_custom_call.1} parent=5 // pred_check_branch
        %1076 = sbr.rel (%p1074) target = $region60
      $region59: #{tpu_custom_call.1} parent=5 // pred_region
        %s1077 = ssub.s32 %s16, 2
      $region60: #{tpu_custom_call.1} parent=5 // pred_fallthru
        _
    $region6: #{tpu_custom_call.1} parent=1 // loop_footer
      %s20 = sadd.s32 1, %s16
    $region7: #{tpu_custom_call.1} parent=1 // loop_footer_branch
      %15 = sbr.rel target = $region3
    $region8: #{tpu_custom_call.1} parent=1 // loop_exit
      _
    %1078 = vsyncpa [#allocation4], 1
    %s1079 = scalar_lea.sflag [#allocation4], 1
    %1080 = vsyncpa %s1079, 1
    %1081 = vsyncpa [#allocation7], 1
    %s1082 = scalar_lea.sflag [#allocation7], 1
    %1083 = vsyncpa %s1082, 1
    %1084 = vsyncpa [#allocation5], 1
    %s1085 = scalar_lea.sflag [#allocation5], 1
    %1086 = vsyncpa %s1085, 1

</llo_original>
